<compile_context>
chip_gen: v7x
topology: tpu7x:2x2x1
jax: 0.10.0
libtpu: 0.0.40
codegen_flags: <defaults>
</compile_context>

<pallas_src>
import functools

import numpy as np
import jax
import jax.numpy as jnp
from jax.experimental import pallas as pl
from jax.experimental.pallas import tpu as pltpu


# --------------------------------------------------------------------------
# Pallas kernel: fused (row-interp @ image @ col-interp) for all channels.
# --------------------------------------------------------------------------
def _zoom_kernel(wh_ref, wwt_bd_ref, x_ref, o_ref):
    # wh_ref     : (final_h, H)        row-interpolation matrix (crop fused)
    # wwt_bd_ref : (C*W, C*out_w)      block-diagonal column-interp matrix
    # x_ref      : (H, C*W)            channel-packed input image (lane-dense)
    # o_ref      : (final_h, C*out_w)  channel-packed output (lane-dense)
    rows = jnp.dot(wh_ref[...], x_ref[...],
                   preferred_element_type=jnp.float32)
    o_ref[...] = jnp.dot(rows, wwt_bd_ref[...],
                         preferred_element_type=jnp.float32).astype(o_ref.dtype)


# --------------------------------------------------------------------------
# Host-side (numpy) weight construction, cached per zoom level / shape.
# --------------------------------------------------------------------------
@functools.lru_cache(maxsize=None)
def _bilinear_matrix_np(out_size: int, in_size: int) -> np.ndarray:
    """Dense (out_size, in_size) bilinear interpolation matrix,
    align_corners=False semantics (matches torch bilinear upscaling)."""
    scale = in_size / out_size
    dst = np.arange(out_size, dtype=np.float64)
    src = (dst + 0.5) * scale - 0.5
    src = np.maximum(src, 0.0)                      # PyTorch clamps negative src
    i0 = np.floor(src)
    frac = (src - i0).astype(np.float32)
    i0c = np.clip(i0, 0, in_size - 1).astype(np.int64)
    i1c = np.clip(i0 + 1, 0, in_size - 1).astype(np.int64)
    m = np.zeros((out_size, in_size), dtype=np.float32)
    rows = np.arange(out_size)
    np.add.at(m, (rows, i0c), 1.0 - frac)
    np.add.at(m, (rows, i1c), frac)
    return m


@functools.lru_cache(maxsize=None)
def _zoom_weights(c: int, h: int, w: int, out_h: int, out_w: int,
                  final_h: int):
    """Device copies of (Wh_cropped, block-diagonal Wwt), built once."""
    wh = _bilinear_matrix_np(out_h, h)[:final_h, :]            # (final_h, H)
    wwt = _bilinear_matrix_np(out_w, w).T                      # (W, out_w)
    wwt_bd = np.kron(np.eye(c, dtype=np.float32), wwt)         # (C*W, C*out_w)
    return jnp.asarray(wh), jnp.asarray(wwt_bd)


@functools.lru_cache(maxsize=None)
def _build_zoom_fn(c: int, h: int, w: int, out_w: int, final_h: int):
    """One jitted program per static shape: pack -> pallas kernel -> unpack."""
    kernel_call = pl.pallas_call(
        _zoom_kernel,
        out_shape=jax.ShapeDtypeStruct((final_h, c * out_w), jnp.float32),
        grid=(1,),                     # single fused invocation, all channels
        in_specs=[
            pl.BlockSpec((final_h, h), lambda i: (0, 0)),
            pl.BlockSpec((c * w, c * out_w), lambda i: (0, 0)),
            pl.BlockSpec((h, c * w), lambda i: (0, 0)),
        ],
        out_specs=pl.BlockSpec((final_h, c * out_w), lambda i: (0, 0)),
        compiler_params=pltpu.CompilerParams(
            dimension_semantics=("arbitrary",)),
    )

    def fn(wh, wwt_bd, image):
        # Pack channels into the lane (last) dimension: (H, C*W).
        x_packed = jnp.transpose(image, (1, 0, 2)).reshape(h, c * w)
        out_packed = kernel_call(wh, wwt_bd, x_packed)
        # Unpack channels back to CHW.
        return out_packed.reshape(final_h, c, out_w).transpose(1, 0, 2)

    return jax.jit(fn)


# --------------------------------------------------------------------------
# Public API.
# --------------------------------------------------------------------------
def _sample_zoom(key, min_zoom: float, max_zoom: float,
                 num_zoom_levels: int) -> float:
    """Sample a zoom factor quantized to `num_zoom_levels` discrete levels.

    Quantization bounds the number of distinct static output shapes, so at
    most `num_zoom_levels` Pallas compiles ever happen.  One scalar
    device->host sync per call is unavoidable (output shape must be static).
    """
    idx = int(jax.random.randint(key, (), 0, num_zoom_levels))
    if num_zoom_levels <= 1:
        return float(min_zoom)
    return float(min_zoom + (max_zoom - min_zoom) * idx / (num_zoom_levels - 1))


def zoom_in(image: jnp.ndarray, zoom: float) -> jnp.ndarray:
    """Deterministic bilinear zoom-in by `zoom` + top-square crop.

    image: (C, H, W) float32.  Returns (C, final_h, out_w).
    """
    c, h, w = image.shape
    out_h = int(zoom * h)
    out_w = int(zoom * w)
    # CropTopSquare: if new height > new width, keep only the top out_w rows.
    final_h = out_w if out_h > out_w else out_h

    wh, wwt_bd = _zoom_weights(c, h, w, out_h, out_w, final_h)
    fn = _build_zoom_fn(c, h, w, out_w, final_h)
    return fn(wh, wwt_bd, image)


def random_zoom_in(image: jnp.ndarray, key, min_zoom: float = 1.0,
                   max_zoom: float = 1.5, num_zoom_levels: int = 8) -> jnp.ndarray:
    """image: (C, H, W) float32.  Random zoom-in + top-square crop."""
    # TODO(synk): torch.rand-style continuous zoom sampling has no Pallas
    # equivalent (output shape must be static); we quantize to a few levels.
    zoom = _sample_zoom(key, min_zoom, max_zoom, num_zoom_levels)
    return zoom_in(image, zoom)


if __name__ == "__main__":
    key = jax.random.PRNGKey(0)
    k_img, k_zoom = jax.random.split(key)

    # Small CHW image, consistent with the module's forward (image: C,H,W).
    C, H, W = 3, 16, 16
    image = jax.random.uniform(k_img, (C, H, W), dtype=jnp.float32)

    out = random_zoom_in(image, k_zoom, min_zoom=1.0, max_zoom=1.5)
    out = jax.block_until_ready(out)

    # Second call at the same zoom level hits all caches (no retrace).
    out2 = jax.block_until_ready(random_zoom_in(image, k_zoom, 1.0, 1.5))

    # Reference check with plain JAX (same separable bilinear matrices).
    zoom = _sample_zoom(k_zoom, 1.0, 1.5, 8)
    oh, ow = int(zoom * H), int(zoom * W)
    fh = ow if oh > ow else oh
    wh_ref = jnp.asarray(_bilinear_matrix_np(oh, H)[:fh, :])
    ww_ref = jnp.asarray(_bilinear_matrix_np(ow, W))
    ref = jnp.einsum('oh,chw,pw->cop', wh_ref, image, ww_ref)

    assert out.shape == (C, fh, ow), (out.shape, (C, fh, ow))
    assert jnp.allclose(out, ref, atol=1e-5, rtol=1e-5)
    assert jnp.allclose(out2, ref, atol=1e-5, rtol=1e-5)
    print("KERNEL_OK")
</pallas_src>

<mosaic_0001>
module attributes {stable_mosaic.version = 11 : i64} {
  func.func @_zoom_kernel(%arg0: i32, %arg1: memref<22x16xf32, #tpu.memory_space<vmem>>, %arg2: memref<48x66xf32, #tpu.memory_space<vmem>>, %arg3: memref<16x48xf32, #tpu.memory_space<vmem>>, %arg4: memref<22x66xf32, #tpu.memory_space<vmem>>) attributes {dimension_semantics = [#tpu.dimension_semantics<arbitrary>], iteration_bounds = array<i64: 1>, scalar_prefetch = 0 : i64, scratch_operands = 0 : i64, tpu.core_type = #tpu.core_type<tc>, window_params = [{pipeline_mode = #tpu.pipeline_mode<synchronous>, transform_indices = @transform_0, window_bounds = array<i64: 22, 16>}, {pipeline_mode = #tpu.pipeline_mode<synchronous>, transform_indices = @transform_1, window_bounds = array<i64: 48, 66>}, {pipeline_mode = #tpu.pipeline_mode<synchronous>, transform_indices = @transform_2, window_bounds = array<i64: 16, 48>}, {pipeline_mode = #tpu.pipeline_mode<synchronous>, transform_indices = @transform_3, window_bounds = array<i64: 22, 66>}]} {
    %c0 = arith.constant 0 : index
    %c0_0 = arith.constant 0 : index
    %0 = vector.load %arg1[%c0, %c0_0] : memref<22x16xf32, #tpu.memory_space<vmem>>, vector<22x16xf32>
    %c0_1 = arith.constant 0 : index
    %c0_2 = arith.constant 0 : index
    %1 = vector.load %arg3[%c0_1, %c0_2] : memref<16x48xf32, #tpu.memory_space<vmem>>, vector<16x48xf32>
    %cst = arith.constant dense<0.000000e+00> : vector<22x48xf32>
    %2 = tpu.matmul %0, %1, %cst {dimension_numbers = #tpu.dot_dimension_numbers<[1], [0], [0], [1], [0, 0, 1, 1], [], []>} : vector<22x16xf32>, vector<16x48xf32>, vector<22x48xf32> -> vector<22x48xf32>
    %c0_3 = arith.constant 0 : index
    %c0_4 = arith.constant 0 : index
    %3 = vector.load %arg2[%c0_3, %c0_4] : memref<48x66xf32, #tpu.memory_space<vmem>>, vector<48x66xf32>
    %cst_5 = arith.constant dense<0.000000e+00> : vector<22x66xf32>
    %4 = tpu.matmul %2, %3, %cst_5 {dimension_numbers = #tpu.dot_dimension_numbers<[1], [0], [0], [1], [0, 0, 1, 1], [], []>} : vector<22x48xf32>, vector<48x66xf32>, vector<22x66xf32> -> vector<22x66xf32>
    %c0_6 = arith.constant 0 : index
    %c0_7 = arith.constant 0 : index
    %5 = vector.load %arg4[%c0_6, %c0_7] : memref<22x66xf32, #tpu.memory_space<vmem>>, vector<22x66xf32>
    tpu.vector_store %arg4[%c0_6, %c0_7], %4 {strides = array<i32>} : memref<22x66xf32, #tpu.memory_space<vmem>>, vector<22x66xf32>,
    return
  }
  func.func @transform_0(%arg0: i32) -> (i32, i32) {
    %c0_i32 = arith.constant 0 : i32
    %c0_i32_0 = arith.constant 0 : i32
    %c0_i32_1 = arith.constant 0 : i32
    return %c0_i32, %c0_i32_0 : i32, i32
  }
  func.func @transform_1(%arg0: i32) -> (i32, i32) {
    %c0_i32 = arith.constant 0 : i32
    %c0_i32_0 = arith.constant 0 : i32
    %c0_i32_1 = arith.constant 0 : i32
    return %c0_i32, %c0_i32_0 : i32, i32
  }
  func.func @transform_2(%arg0: i32) -> (i32, i32) {
    %c0_i32 = arith.constant 0 : i32
    %c0_i32_0 = arith.constant 0 : i32
    %c0_i32_1 = arith.constant 0 : i32
    return %c0_i32, %c0_i32_0 : i32, i32
  }
  func.func @transform_3(%arg0: i32) -> (i32, i32) {
    %c0_i32 = arith.constant 0 : i32
    %c0_i32_0 = arith.constant 0 : i32
    %c0_i32_1 = arith.constant 0 : i32
    return %c0_i32, %c0_i32_0 : i32, i32
  }
}

</mosaic_0001>

<llo_original>
// kernel: fn.1
$region0: #{fn.1}
  #allocation0 [shape = 'u32[]', space=smem, size = 0x4, offset = 0x4, fixed_abs, tag = 'smem constant byte address 0x4 - core index']
  #allocation1 [shape = 'u32[144,128]{1,0:T(1,128)}', space=vmem, size = 0x12000, scoped, tag = 'internal scratch']
  %s0 = inlined_call_operand.vmem [shape: f32[22,16], index: 0, kind: input, shape index: {}]
  %s1 = inlined_call_operand.vmem [shape: f32[48,66], index: 1, kind: input, shape index: {}]
  %s2 = inlined_call_operand.vmem [shape: f32[16,48], index: 2, kind: input, shape index: {}]
  %s3 = inlined_call_operand.vmem [shape: f32[22,66], index: 3, kind: output, shape index: {}]
  %s4 = sld [smem:[#allocation0]]
  $region22: #{fn.1} parent=0
    _
  %s6 = ssub.s32 1, %s4
  %s7 = scalar_select 0, %s6, %s4
  // Predicated region
  $region2: #{fn.1} parent=0 // pred_check
    _
  $region3: #{fn.1} parent=0 // pred_check_branch
    %9 = sbr.rel (0) target = $region5
  $region4: #{fn.1} parent=0 // pred_region
    _
  $region5: #{fn.1} parent=0 // pred_fallthru
    _
  // Predicated region
  $region6: #{fn.1} parent=0 // pred_check
    _
  $region7: #{fn.1} parent=0 // pred_check_branch
    %11 = sbr.rel (0) target = $region9
  $region8: #{fn.1} parent=0 // pred_region
    _
  $region9: #{fn.1} parent=0 // pred_fallthru
    _
  // Predicated region
  $region10: #{fn.1} parent=0 // pred_check
    _
  $region11: #{fn.1} parent=0 // pred_check_branch
    %13 = sbr.rel (0) target = $region13
  $region12: #{fn.1} parent=0 // pred_region
    _
  $region13: #{fn.1} parent=0 // pred_fallthru
    _
  %v14 = vld [vmem:[%s0] sm:$0xff]
  %v15 = vld [vmem:[%s0 + $0x8] sm:$0xff]
  %v16 = vld [vmem:[%s0 + $0x10] sm:$0x3f]
  %v17 = vld [vmem:[%s2] sm:$0xff]
  %v18 = vld [vmem:[%s2 + $0x8] sm:$0xff]
  %vm19 = vcmask 130048
  %v21 = vsel %vm19, %v14, 0
  %v24 = vsel %vm19, %v15, 0
  %v27 = vsel %vm19, %v16, 0
  %29 = vmatprep.subr.mxu0 0.0
  %30 = vmatpush1.msra.mxu0 %v17
  %31 = vmatprep.subr.mxu0 0.0
  %32 = vmatpush1.msra.mxu0 %v18
  %33 = vmatprep.subr.mxu0 0.0
  %34 = vmatpush1.msra.mxu0 0.0
  %35 = vmatprep.subr.mxu0 0.0
  %36 = vmatpush1.msra.mxu0 0.0
  %37 = vmatprep.subr.mxu0 0.0
  %38 = vmatpush1.msra.mxu0 0.0
  %39 = vmatprep.subr.mxu0 0.0
  %40 = vmatpush1.msra.mxu0 0.0
  %41 = vmatprep.subr.mxu0 0.0
  %42 = vmatpush1.msra.mxu0 0.0
  %43 = vmatprep.subr.mxu0 0.0
  %44 = vmatpush1.msra.mxu0 0.0
  %45 = vmatprep.subr.mxu0 0.0
  %46 = vmatpush1.msra.mxu0 0.0
  %47 = vmatprep.subr.mxu0 0.0
  %48 = vmatpush1.msra.mxu0 0.0
  %49 = vmatprep.subr.mxu0 0.0
  %50 = vmatpush1.msra.mxu0 0.0
  %51 = vmatprep.subr.mxu0 0.0
  %52 = vmatpush1.msra.mxu0 0.0
  %53 = vmatprep.subr.mxu0 0.0
  %54 = vmatpush1.msra.mxu0 0.0
  %55 = vmatprep.subr.mxu0 0.0
  %56 = vmatpush1.msra.mxu0 0.0
  %57 = vmatprep.subr.mxu0 0.0
  %58 = vmatpush1.msra.mxu0 0.0
  %59 = vmatprep.subr.mxu0 0.0
  %60 = vmatpush1.msra.mxu0 0.0
  %61 = vmatprep.subr.mxu0 0.0
  %62 = vmatpush1.msra.mxu0 0.0
  %63 = vmatprep.subr.mxu0 0.0
  %64 = vmatpush1.msra.mxu0 0.0
  %65 = vmatprep.subr.mxu0 0.0
  %66 = vmatpush1.msra.mxu0 0.0
  %67 = vmatprep.subr.mxu0 0.0
  %68 = vmatpush1.msra.mxu0 0.0
  %69 = vmatprep.subr.mxu0 0.0
  %70 = vmatpush1.msra.mxu0 0.0
  %71 = vmatprep.subr.mxu0 0.0
  %72 = vmatpush1.msra.mxu0 0.0
  %73 = vmatprep.subr.mxu0 0.0
  %74 = vmatpush1.msra.mxu0 0.0
  %75 = vmatprep.subr.mxu0 0.0
  %76 = vmatpush1.msra.mxu0 0.0
  %77 = vmatprep.subr.mxu0 0.0
  %78 = vmatpush1.msra.mxu0 0.0
  %79 = vmatprep.subr.mxu0 0.0
  %80 = vmatpush1.msra.mxu0 0.0
  %81 = vmatprep.subr.mxu0 0.0
  %82 = vmatpush1.msra.mxu0 0.0
  %83 = vmatprep.subr.mxu0 0.0
  %84 = vmatpush1.msra.mxu0 0.0
  %85 = vmatprep.subr.mxu0 0.0
  %86 = vmatpush1.msra.mxu0 0.0
  %87 = vmatprep.subr.mxu0 0.0
  %88 = vmatpush1.msra.mxu0 0.0
  %89 = vmatprep.subr.mxu0 0.0
  %90 = vmatpush1.msra.mxu0 0.0
  %91 = vmatprep.subr.mxu0 0.0
  %92 = vmatpush1.msra.mxu0 0.0
  %93 = vmatprep.mubr.f32.mxu0 0.0
  %94 = vmatmul.mubr.f32.gmra.mrb[0].mxu0 %v21
  %v95 = vpop.f32.mrb[0].mxu0
  %v96 = vadd.f32 0.0, %v95
  %v97 = vpop.f32.mrb[0].mxu0
  %98 = vmatprep.mubr.f32.mxu0 0.0
  %99 = vmatmul.mubr.f32.gmra.mrb[0].mxu0 %v24
  %v100 = vpop.f32.mrb[0].mxu0
  %v101 = vadd.f32 0.0, %v100
  %v102 = vpop.f32.mrb[0].mxu0
  %103 = vmatprep.mubr.f32.mxu0 0.0
  %104 = vmatmul.mubr.f32.gmra.mrb[0].mxu0 %v27
  %v105 = vpop.f32.mrb[0].mxu0
  %v106 = vadd.f32 0.0, %v105
  %v107 = vpop.f32.mrb[0].mxu0
  %108 = vdwg.mxu0
  %v109 = vld [vmem:[%s1] sm:$0xff]
  %v110 = vld [vmem:[%s1 + $0x8] sm:$0xff]
  %v111 = vld [vmem:[%s1 + $0x10] sm:$0xff]
  %v112 = vld [vmem:[%s1 + $0x18] sm:$0xff]
  %v113 = vld [vmem:[%s1 + $0x20] sm:$0xff]
  %v114 = vld [vmem:[%s1 + $0x28] sm:$0xff]
  %vm115 = vcmask 392192
  %v117 = vsel %vm115, %v96, 0
  %v120 = vsel %vm115, %v101, 0
  %v123 = vsel %vm115, %v106, 0
  %125 = vmatprep.subr.mxu0 0.0
  %126 = vmatpush1.msra.mxu0 %v109
  %127 = vmatprep.subr.mxu0 0.0
  %128 = vmatpush1.msra.mxu0 %v110
  %129 = vmatprep.subr.mxu0 0.0
  %130 = vmatpush1.msra.mxu0 %v111
  %131 = vmatprep.subr.mxu0 0.0
  %132 = vmatpush1.msra.mxu0 %v112
  %133 = vmatprep.subr.mxu0 0.0
  %134 = vmatpush1.msra.mxu0 %v113
  %135 = vmatprep.subr.mxu0 0.0
  %136 = vmatpush1.msra.mxu0 %v114
  %137 = vmatprep.subr.mxu0 0.0
  %138 = vmatpush1.msra.mxu0 0.0
  %139 = vmatprep.subr.mxu0 0.0
  %140 = vmatpush1.msra.mxu0 0.0
  %141 = vmatprep.subr.mxu0 0.0
  %142 = vmatpush1.msra.mxu0 0.0
  %143 = vmatprep.subr.mxu0 0.0
  %144 = vmatpush1.msra.mxu0 0.0
  %145 = vmatprep.subr.mxu0 0.0
  %146 = vmatpush1.msra.mxu0 0.0
  %147 = vmatprep.subr.mxu0 0.0
  %148 = vmatpush1.msra.mxu0 0.0
  %149 = vmatprep.subr.mxu0 0.0
  %150 = vmatpush1.msra.mxu0 0.0
  %151 = vmatprep.subr.mxu0 0.0
  %152 = vmatpush1.msra.mxu0 0.0
  %153 = vmatprep.subr.mxu0 0.0
  %154 = vmatpush1.msra.mxu0 0.0
  %155 = vmatprep.subr.mxu0 0.0
  %156 = vmatpush1.msra.mxu0 0.0
  %157 = vmatprep.subr.mxu0 0.0
  %158 = vmatpush1.msra.mxu0 0.0
  %159 = vmatprep.subr.mxu0 0.0
  %160 = vmatpush1.msra.mxu0 0.0
  %161 = vmatprep.subr.mxu0 0.0
  %162 = vmatpush1.msra.mxu0 0.0
  %163 = vmatprep.subr.mxu0 0.0
  %164 = vmatpush1.msra.mxu0 0.0
  %165 = vmatprep.subr.mxu0 0.0
  %166 = vmatpush1.msra.mxu0 0.0
  %167 = vmatprep.subr.mxu0 0.0
  %168 = vmatpush1.msra.mxu0 0.0
  %169 = vmatprep.subr.mxu0 0.0
  %170 = vmatpush1.msra.mxu0 0.0
  %171 = vmatprep.subr.mxu0 0.0
  %172 = vmatpush1.msra.mxu0 0.0
  %173 = vmatprep.subr.mxu0 0.0
  %174 = vmatpush1.msra.mxu0 0.0
  %175 = vmatprep.subr.mxu0 0.0
  %176 = vmatpush1.msra.mxu0 0.0
  %177 = vmatprep.subr.mxu0 0.0
  %178 = vmatpush1.msra.mxu0 0.0
  %179 = vmatprep.subr.mxu0 0.0
  %180 = vmatpush1.msra.mxu0 0.0
  %181 = vmatprep.subr.mxu0 0.0
  %182 = vmatpush1.msra.mxu0 0.0
  %183 = vmatprep.subr.mxu0 0.0
  %184 = vmatpush1.msra.mxu0 0.0
  %185 = vmatprep.subr.mxu0 0.0
  %186 = vmatpush1.msra.mxu0 0.0
  %187 = vmatprep.subr.mxu0 0.0
  %188 = vmatpush1.msra.mxu0 0.0
  %189 = vmatprep.mubr.f32.mxu0 0.0
  %190 = vmatmul.mubr.f32.gmra.mrb[0].mxu0 %v117
  %v191 = vpop.f32.mrb[0].mxu0
  %v192 = vadd.f32 0.0, %v191
  %v193 = vpop.f32.mrb[0].mxu0
  %194 = vmatprep.mubr.f32.mxu0 0.0
  %195 = vmatmul.mubr.f32.gmra.mrb[0].mxu0 %v120
  %v196 = vpop.f32.mrb[0].mxu0
  %v197 = vadd.f32 0.0, %v196
  %v198 = vpop.f32.mrb[0].mxu0
  %199 = vmatprep.mubr.f32.mxu0 0.0
  %200 = vmatmul.mubr.f32.gmra.mrb[0].mxu0 %v123
  %v201 = vpop.f32.mrb[0].mxu0
  %v202 = vadd.f32 0.0, %v201
  %v203 = vpop.f32.mrb[0].mxu0
  %204 = vdwg.mxu0
  %vm205 = vcmask 539648
  %206 = vst.msk [vmem:[%s3] sm:$0xff] %vm205, %v192
  %207 = vst.msk [vmem:[%s3 + $0x8] sm:$0xff] %vm205, %v197
  %vm208 = vcmask 537600
  %209 = vst.msk [vmem:[%s3 + $0x10] sm:$0x3f] %vm208, %v202
  // Predicated region
  $region14: #{fn.1} parent=0 // pred_check
    _
  $region15: #{fn.1} parent=0 // pred_check_branch
    %211 = sbr.rel (0) target = $region17
  $region16: #{fn.1} parent=0 // pred_region
    _
  $region17: #{fn.1} parent=0 // pred_fallthru
    _
  // Predicated region
  $region18: #{fn.1} parent=0 // pred_check
    _
  $region19: #{fn.1} parent=0 // pred_check_branch
    %213 = sbr.rel (0) target = $region21
  $region20: #{fn.1} parent=0 // pred_region
    _
  $region21: #{fn.1} parent=0 // pred_fallthru
    _

</llo_original>
